<compile_context>
chip_gen: v6e
topology: v6e:2x2x1
jax: 0.10.0
libtpu: 0.0.40
codegen_flags: <defaults>
</compile_context>

<pallas_src>
import functools

import jax
import jax.numpy as jnp
from jax.experimental import pallas as pl
from jax.experimental.pallas import tpu as pltpu

_EPS = 1e-12  # F.normalize(p=2, dim=1) default eps


def _mixer_kernel_plain(x_ref, w_ref, o_ref):
    # Fused matmul (weights pre-folded, possibly zero-padded columns) +
    # row-wise L2 normalization.  Pad columns are zero and don't affect `sq`.
    h = jnp.dot(x_ref[...], w_ref[...], preferred_element_type=jnp.float32)
    sq = jnp.sum(h * h, axis=1, keepdims=True)
    inv = jax.lax.rsqrt(jnp.maximum(sq, _EPS * _EPS))
    o_ref[...] = (h * inv).astype(o_ref.dtype)


def _mixer_kernel_packed(x_ref, w_ref, s_ref, o_ref):
    # Lane-packed variant: each kernel row holds p independent feature vectors
    # of length `dim` (p*dim is a multiple of 128 lanes).  s_ref is a
    # block-ones (p*dim, p*dim) matrix that broadcasts each segment's sum of
    # squares back to every lane of that segment (one small MXU matmul,
    # no in-kernel reshapes or cross-lane reductions).
    h = jnp.dot(x_ref[...], w_ref[...], preferred_element_type=jnp.float32)
    sq = jnp.dot(h * h, s_ref[...], preferred_element_type=jnp.float32)
    inv = jax.lax.rsqrt(jnp.maximum(sq, _EPS * _EPS))
    o_ref[...] = (h * inv).astype(o_ref.dtype)


def _pick_block_rows(rows, target=512):
    """Largest multiple-of-8 divisor of `rows` that is <= target, preferring
    >= 2 grid steps (v7x megacore) once `rows` is large enough."""
    if rows % 8 != 0 or rows <= 256:
        return rows  # full-extent block is always legal
    limit = min(target, rows // 2)
    limit -= limit % 8
    for b in range(limit, 7, -8):
        if rows % b == 0:
            return b
    return rows


@functools.partial(jax.jit, static_argnames=("block_rows", "compute_dtype"))
def mixer_forward(x, fc1, fc2, fc3, *, block_rows=None,
                  compute_dtype=jnp.bfloat16):
    n, two_dim = x.shape
    dim = fc1.shape[1]
    assert two_dim == 2 * dim and fc1.shape == (two_dim, dim)
    assert fc2.shape == (dim, dim) and fc3.shape == (dim, dim)
    out_dtype = x.dtype

    # Fold the three matmuls into one weight (done once, in f32, by XLA).
    w = (fc1.astype(jnp.float32) @ fc2.astype(jnp.float32)
         @ fc3.astype(jnp.float32))

    # Row-packing factor so the kernel's output last dim is lane-dense (128k).
    if dim % 128 == 0:
        p = 1
    elif (128 % dim == 0) and (n % (128 // dim) == 0):
        p = 128 // dim
    else:
        p = 1  # fall back to zero-padded output columns (still lane-dense)

    rows = n // p
    in_w = p * two_dim

    x_p = x.reshape(rows, in_w).astype(compute_dtype)
    if p > 1:
        pad_cols = 0
        out_w = p * dim
        w_p = jnp.kron(jnp.eye(p, dtype=jnp.float32), w).astype(compute_dtype)
        seg = jnp.kron(jnp.eye(p, dtype=jnp.float32),
                       jnp.ones((dim, dim), jnp.float32))
    else:
        # Pad W's output columns with zeros up to a multiple of 128 lanes so
        # the output tile is lane-dense (unmasked stores). Zero columns leave
        # the row norms unchanged.
        pad_cols = (-dim) % 128
        out_w = dim + pad_cols
        w_p = jnp.pad(w, ((0, 0), (0, pad_cols))).astype(compute_dtype)
        seg = None

    if block_rows is None:
        block_rows = _pick_block_rows(rows)
    assert rows % block_rows == 0
    grid = (rows // block_rows,)

    x_spec = pl.BlockSpec((block_rows, in_w), lambda i: (i, 0))
    w_spec = pl.BlockSpec((in_w, out_w), lambda i: (0, 0))
    out_spec = pl.BlockSpec((block_rows, out_w), lambda i: (i, 0))

    if p > 1:
        kernel = _mixer_kernel_packed
        in_specs = [x_spec, w_spec,
                    pl.BlockSpec((out_w, out_w), lambda i: (0, 0))]
        args = (x_p, w_p, seg)
    else:
        kernel = _mixer_kernel_plain
        in_specs = [x_spec, w_spec]
        args = (x_p, w_p)

    out_p = pl.pallas_call(
        kernel,
        out_shape=jax.ShapeDtypeStruct((rows, out_w), out_dtype),
        grid_spec=pltpu.PrefetchScalarGridSpec(
            num_scalar_prefetch=0,
            grid=grid,
            in_specs=in_specs,
            out_specs=out_spec,
        ),
        compiler_params=pltpu.CompilerParams(
            dimension_semantics=("parallel",),
        ),
    )(*args)

    if p > 1:
        return out_p.reshape(n, dim)
    if pad_cols:
        return out_p[:, :dim]
    return out_p
    # TODO(synk): for very large `dim` (folded weight > VMEM) this single-shot
    # weight-resident scheme would need K/N tiling with a two-pass norm.


def xavier_normal(key, shape, dtype=jnp.float32):
    # torch.nn.init.xavier_normal_: std = sqrt(2 / (fan_in + fan_out))
    fan_out, fan_in = shape[0], shape[1]
    std = (2.0 / (fan_in + fan_out)) ** 0.5
    return std * jax.random.normal(key, shape, dtype=dtype)


def reference_forward(x, fc1, fc2, fc3):
    h = x @ fc1
    h = h @ fc2
    h = h @ fc3
    norm = jnp.sqrt(jnp.sum(h * h, axis=1, keepdims=True))
    return h / jnp.maximum(norm, _EPS)


if __name__ == "__main__":
    dim = 64          # Mixer(dim): input features = 2*dim = 128
    batch = 256

    key = jax.random.PRNGKey(0)
    kx, k1, k2, k3 = jax.random.split(key, 4)

    x = jax.random.normal(kx, (batch, 2 * dim), dtype=jnp.float32)
    fc1 = xavier_normal(k1, (2 * dim, dim))
    fc2 = xavier_normal(k2, (dim, dim))
    fc3 = xavier_normal(k3, (dim, dim))

    ref = reference_forward(x, fc1, fc2, fc3)

    # f32 operands: tight check against the unfused PyTorch-equivalent math.
    out_f32 = jax.block_until_ready(
        mixer_forward(x, fc1, fc2, fc3, compute_dtype=jnp.float32))
    assert out_f32.shape == (batch, dim)
    assert jnp.allclose(out_f32, ref, atol=1e-4, rtol=1e-4)

    # Default fast path (bf16 matmul operands, f32 accumulation): loose check.
    out_bf16 = jax.block_until_ready(mixer_forward(x, fc1, fc2, fc3))
    assert out_bf16.shape == (batch, dim)
    assert jnp.allclose(out_bf16, ref, atol=3e-2, rtol=3e-2)

    print("KERNEL_OK")
</pallas_src>

<mosaic_0001>
module attributes {stable_mosaic.version = 11 : i64} {
  func.func @_mixer_kernel_packed(%arg0: i32, %arg1: memref<128x256xf32, #tpu.memory_space<vmem>>, %arg2: memref<256x128xf32, #tpu.memory_space<vmem>>, %arg3: memref<128x128xf32, #tpu.memory_space<vmem>>, %arg4: memref<128x128xf32, #tpu.memory_space<vmem>>) attributes {dimension_semantics = [#tpu.dimension_semantics<parallel>], iteration_bounds = array<i64: 1>, scalar_prefetch = 0 : i64, scratch_operands = 0 : i64, tpu.core_type = #tpu.core_type<tc>, window_params = [{transform_indices = @transform_0, window_bounds = array<i64: 128, 256>}, {pipeline_mode = #tpu.pipeline_mode<synchronous>, transform_indices = @transform_1, window_bounds = array<i64: 256, 128>}, {pipeline_mode = #tpu.pipeline_mode<synchronous>, transform_indices = @transform_2, window_bounds = array<i64: 128, 128>}, {transform_indices = @transform_3, window_bounds = array<i64: 128, 128>}]} {
    %c0 = arith.constant 0 : index
    %c0_0 = arith.constant 0 : index
    %0 = vector.load %arg1[%c0, %c0_0] : memref<128x256xf32, #tpu.memory_space<vmem>>, vector<128x256xf32>
    %c0_1 = arith.constant 0 : index
    %c0_2 = arith.constant 0 : index
    %1 = vector.load %arg2[%c0_1, %c0_2] : memref<256x128xf32, #tpu.memory_space<vmem>>, vector<256x128xf32>
    %cst = arith.constant dense<0.000000e+00> : vector<128x128xf32>
    %2 = tpu.matmul %0, %1, %cst {dimension_numbers = #tpu.dot_dimension_numbers<[1], [0], [0], [1], [0, 0, 1, 1], [], []>} : vector<128x256xf32>, vector<256x128xf32>, vector<128x128xf32> -> vector<128x128xf32>
    %3 = arith.mulf %2, %2 : vector<128x128xf32>
    %c0_3 = arith.constant 0 : index
    %c0_4 = arith.constant 0 : index
    %4 = vector.load %arg3[%c0_3, %c0_4] : memref<128x128xf32, #tpu.memory_space<vmem>>, vector<128x128xf32>
    %cst_5 = arith.constant dense<0.000000e+00> : vector<128x128xf32>
    %5 = tpu.matmul %3, %4, %cst_5 {dimension_numbers = #tpu.dot_dimension_numbers<[1], [0], [0], [1], [0, 0, 1, 1], [], []>} : vector<128x128xf32>, vector<128x128xf32>, vector<128x128xf32> -> vector<128x128xf32>
    %cst_6 = arith.constant 1.000000e-24 : f32
    %6 = vector.broadcast %cst_6 : f32 to vector<128x128xf32>
    %7 = arith.maximumf %5, %6 : vector<128x128xf32>
    %8 = math.rsqrt %7 : vector<128x128xf32>
    %9 = arith.mulf %2, %8 : vector<128x128xf32>
    %c0_7 = arith.constant 0 : index
    %c0_8 = arith.constant 0 : index
    %10 = vector.load %arg4[%c0_7, %c0_8] : memref<128x128xf32, #tpu.memory_space<vmem>>, vector<128x128xf32>
    tpu.vector_store %arg4[%c0_7, %c0_8], %9 {strides = array<i32>} : memref<128x128xf32, #tpu.memory_space<vmem>>, vector<128x128xf32>,
    return
  }
  func.func @transform_0(%arg0: i32) -> (i32, i32) {
    %c0_i32 = arith.constant 0 : i32
    %c0_i32_0 = arith.constant 0 : i32
    return %arg0, %c0_i32 : i32, i32
  }
  func.func @transform_1(%arg0: i32) -> (i32, i32) {
    %c0_i32 = arith.constant 0 : i32
    %c0_i32_0 = arith.constant 0 : i32
    %c0_i32_1 = arith.constant 0 : i32
    return %c0_i32, %c0_i32_0 : i32, i32
  }
  func.func @transform_2(%arg0: i32) -> (i32, i32) {
    %c0_i32 = arith.constant 0 : i32
    %c0_i32_0 = arith.constant 0 : i32
    %c0_i32_1 = arith.constant 0 : i32
    return %c0_i32, %c0_i32_0 : i32, i32
  }
  func.func @transform_3(%arg0: i32) -> (i32, i32) {
    %c0_i32 = arith.constant 0 : i32
    %c0_i32_0 = arith.constant 0 : i32
    return %arg0, %c0_i32 : i32, i32
  }
}

</mosaic_0001>

<llo_original>
// kernel: mixer_forward.1
$region0: #{mixer_forward.1}
  #allocation0 [shape = 'u32[]', space=smem, size = 0x4, offset = 0x4, fixed_abs, tag = 'smem constant byte address 0x4 - core index']
  #allocation1 [shape = 'u32[144,128]{1,0:T(1,128)}', space=vmem, size = 0x12000, scoped, tag = 'internal scratch']
  %s0 = inlined_call_operand.vmem [shape: f32[128,256], index: 0, kind: input, shape index: {}]
  %s1 = inlined_call_operand.vmem [shape: f32[256,128], index: 1, kind: input, shape index: {}]
  %s2 = inlined_call_operand.vmem [shape: f32[128,128], index: 2, kind: input, shape index: {}]
  %s3 = inlined_call_operand.vmem [shape: f32[128,128], index: 3, kind: output, shape index: {}]
  %s4 = sld [smem:[#allocation0]]
  $region22: #{mixer_forward.1} parent=0
    _
  %s6 = ssub.s32 1, %s4
  %s7 = scalar_select 0, %s6, %s4
  // Predicated region
  $region2: #{mixer_forward.1} parent=0 // pred_check
    _
  $region3: #{mixer_forward.1} parent=0 // pred_check_branch
    %9 = sbr.rel (0) target = $region5
  $region4: #{mixer_forward.1} parent=0 // pred_region
    _
  $region5: #{mixer_forward.1} parent=0 // pred_fallthru
    _
  // Predicated region
  $region6: #{mixer_forward.1} parent=0 // pred_check
    _
  $region7: #{mixer_forward.1} parent=0 // pred_check_branch
    %11 = sbr.rel (0) target = $region9
  $region8: #{mixer_forward.1} parent=0 // pred_region
    _
  $region9: #{mixer_forward.1} parent=0 // pred_fallthru
    _
  // Predicated region
  $region10: #{mixer_forward.1} parent=0 // pred_check
    _
  $region11: #{mixer_forward.1} parent=0 // pred_check_branch
    %13 = sbr.rel (0) target = $region13
  $region12: #{mixer_forward.1} parent=0 // pred_region
    _
  $region13: #{mixer_forward.1} parent=0 // pred_fallthru
    _
  %v14 = vld [vmem:[%s0] sm:$0xff]
  %v15 = vld [vmem:[%s0 + $0x8] sm:$0xff]
  %v16 = vld [vmem:[%s0 + $0x10] sm:$0xff]
  %v17 = vld [vmem:[%s0 + $0x18] sm:$0xff]
  %v18 = vld [vmem:[%s0 + $0x20] sm:$0xff]
  %v19 = vld [vmem:[%s0 + $0x28] sm:$0xff]
  %v20 = vld [vmem:[%s0 + $0x30] sm:$0xff]
  %v21 = vld [vmem:[%s0 + $0x38] sm:$0xff]
  %v22 = vld [vmem:[%s0 + $0x40] sm:$0xff]
  %v23 = vld [vmem:[%s0 + $0x48] sm:$0xff]
  %v24 = vld [vmem:[%s0 + $0x50] sm:$0xff]
  %v25 = vld [vmem:[%s0 + $0x58] sm:$0xff]
  %v26 = vld [vmem:[%s0 + $0x60] sm:$0xff]
  %v27 = vld [vmem:[%s0 + $0x68] sm:$0xff]
  %v28 = vld [vmem:[%s0 + $0x70] sm:$0xff]
  %v29 = vld [vmem:[%s0 + $0x78] sm:$0xff]
  %v30 = vld [vmem:[%s0 + $0x80] sm:$0xff]
  %v31 = vld [vmem:[%s0 + $0x88] sm:$0xff]
  %v32 = vld [vmem:[%s0 + $0x90] sm:$0xff]
  %v33 = vld [vmem:[%s0 + $0x98] sm:$0xff]
  %v34 = vld [vmem:[%s0 + $0xa0] sm:$0xff]
  %v35 = vld [vmem:[%s0 + $0xa8] sm:$0xff]
  %v36 = vld [vmem:[%s0 + $0xb0] sm:$0xff]
  %v37 = vld [vmem:[%s0 + $0xb8] sm:$0xff]
  %v38 = vld [vmem:[%s0 + $0xc0] sm:$0xff]
  %v39 = vld [vmem:[%s0 + $0xc8] sm:$0xff]
  %v40 = vld [vmem:[%s0 + $0xd0] sm:$0xff]
  %v41 = vld [vmem:[%s0 + $0xd8] sm:$0xff]
  %v42 = vld [vmem:[%s0 + $0xe0] sm:$0xff]
  %v43 = vld [vmem:[%s0 + $0xe8] sm:$0xff]
  %v44 = vld [vmem:[%s0 + $0xf0] sm:$0xff]
  %v45 = vld [vmem:[%s0 + $0xf8] sm:$0xff]
  %v46 = vld [vmem:[%s1] sm:$0xff]
  %v47 = vld [vmem:[%s1 + $0x8] sm:$0xff]
  %v48 = vld [vmem:[%s1 + $0x10] sm:$0xff]
  %v49 = vld [vmem:[%s1 + $0x18] sm:$0xff]
  %v50 = vld [vmem:[%s1 + $0x20] sm:$0xff]
  %v51 = vld [vmem:[%s1 + $0x28] sm:$0xff]
  %v52 = vld [vmem:[%s1 + $0x30] sm:$0xff]
  %v53 = vld [vmem:[%s1 + $0x38] sm:$0xff]
  %v54 = vld [vmem:[%s1 + $0x40] sm:$0xff]
  %v55 = vld [vmem:[%s1 + $0x48] sm:$0xff]
  %v56 = vld [vmem:[%s1 + $0x50] sm:$0xff]
  %v57 = vld [vmem:[%s1 + $0x58] sm:$0xff]
  %v58 = vld [vmem:[%s1 + $0x60] sm:$0xff]
  %v59 = vld [vmem:[%s1 + $0x68] sm:$0xff]
  %v60 = vld [vmem:[%s1 + $0x70] sm:$0xff]
  %v61 = vld [vmem:[%s1 + $0x78] sm:$0xff]
  %v62 = vld [vmem:[%s1 + $0x80] sm:$0xff]
  %v63 = vld [vmem:[%s1 + $0x88] sm:$0xff]
  %v64 = vld [vmem:[%s1 + $0x90] sm:$0xff]
  %v65 = vld [vmem:[%s1 + $0x98] sm:$0xff]
  %v66 = vld [vmem:[%s1 + $0xa0] sm:$0xff]
  %v67 = vld [vmem:[%s1 + $0xa8] sm:$0xff]
  %v68 = vld [vmem:[%s1 + $0xb0] sm:$0xff]
  %v69 = vld [vmem:[%s1 + $0xb8] sm:$0xff]
  %v70 = vld [vmem:[%s1 + $0xc0] sm:$0xff]
  %v71 = vld [vmem:[%s1 + $0xc8] sm:$0xff]
  %v72 = vld [vmem:[%s1 + $0xd0] sm:$0xff]
  %v73 = vld [vmem:[%s1 + $0xd8] sm:$0xff]
  %v74 = vld [vmem:[%s1 + $0xe0] sm:$0xff]
  %v75 = vld [vmem:[%s1 + $0xe8] sm:$0xff]
  %v76 = vld [vmem:[%s1 + $0xf0] sm:$0xff]
  %v77 = vld [vmem:[%s1 + $0xf8] sm:$0xff]
  %78 = vmatprep.subr.mxu0 0.0
  %79 = vmatpush1.msra.mxu0 %v61
  %80 = vmatprep.subr.mxu0 0.0
  %81 = vmatpush1.msra.mxu0 %v60
  %82 = vmatprep.subr.mxu0 0.0
  %83 = vmatpush1.msra.mxu0 %v59
  %84 = vmatprep.subr.mxu0 0.0
  %85 = vmatpush1.msra.mxu0 %v58
  %86 = vmatprep.subr.mxu0 0.0
  %87 = vmatpush1.msra.mxu0 %v57
  %88 = vmatprep.subr.mxu0 0.0
  %89 = vmatpush1.msra.mxu0 %v56
  %90 = vmatprep.subr.mxu0 0.0
  %91 = vmatpush1.msra.mxu0 %v55
  %92 = vmatprep.subr.mxu0 0.0
  %93 = vmatpush1.msra.mxu0 %v54
  %94 = vmatprep.subr.mxu0 0.0
  %95 = vmatpush1.msra.mxu0 %v53
  %96 = vmatprep.subr.mxu0 0.0
  %97 = vmatpush1.msra.mxu0 %v52
  %98 = vmatprep.subr.mxu0 0.0
  %99 = vmatpush1.msra.mxu0 %v51
  %100 = vmatprep.subr.mxu0 0.0
  %101 = vmatpush1.msra.mxu0 %v50
  %102 = vmatprep.subr.mxu0 0.0
  %103 = vmatpush1.msra.mxu0 %v49
  %104 = vmatprep.subr.mxu0 0.0
  %105 = vmatpush1.msra.mxu0 %v48
  %106 = vmatprep.subr.mxu0 0.0
  %107 = vmatpush1.msra.mxu0 %v47
  %108 = vmatprep.subr.mxu0 0.0
  %109 = vmatpush1.msra.mxu0 %v46
  %110 = vmatprep.subr.mxu0 0.0
  %111 = vmatpush2.msra.mxu0 %v77
  %112 = vmatprep.subr.mxu0 0.0
  %113 = vmatpush2.msra.mxu0 %v76
  %114 = vmatprep.subr.mxu0 0.0
  %115 = vmatpush2.msra.mxu0 %v75
  %116 = vmatprep.subr.mxu0 0.0
  %117 = vmatpush2.msra.mxu0 %v74
  %118 = vmatprep.subr.mxu0 0.0
  %119 = vmatpush2.msra.mxu0 %v73
  %120 = vmatprep.subr.mxu0 0.0
  %121 = vmatpush2.msra.mxu0 %v72
  %122 = vmatprep.subr.mxu0 0.0
  %123 = vmatpush2.msra.mxu0 %v71
  %124 = vmatprep.subr.mxu0 0.0
  %125 = vmatpush2.msra.mxu0 %v70
  %126 = vmatprep.subr.mxu0 0.0
  %127 = vmatpush2.msra.mxu0 %v69
  %128 = vmatprep.subr.mxu0 0.0
  %129 = vmatpush2.msra.mxu0 %v68
  %130 = vmatprep.subr.mxu0 0.0
  %131 = vmatpush2.msra.mxu0 %v67
  %132 = vmatprep.subr.mxu0 0.0
  %133 = vmatpush2.msra.mxu0 %v66
  %134 = vmatprep.subr.mxu0 0.0
  %135 = vmatpush2.msra.mxu0 %v65
  %136 = vmatprep.subr.mxu0 0.0
  %137 = vmatpush2.msra.mxu0 %v64
  %138 = vmatprep.subr.mxu0 0.0
  %139 = vmatpush2.msra.mxu0 %v63
  %140 = vmatprep.subr.mxu0 0.0
  %141 = vmatpush2.msra.mxu0 %v62
  %142 = vmatprep.mubr.f32.mxu0 %v15
  %143 = vmatmul.mubr.f32.gmra.mxu0 %v14
  %v144 = vpop.f32.mrf.mxu0
  %v145 = vadd.f32 0.0, %v144
  %v146 = vpop.f32.mrf.mxu0
  %147 = vmatprep.mubr.f32.mxu0 %v17
  %148 = vmatmul.mubr.f32.gmra.mxu0 %v16
  %v149 = vpop.f32.mrf.mxu0
  %v150 = vadd.f32 0.0, %v149
  %v151 = vpop.f32.mrf.mxu0
  %152 = vmatprep.mubr.f32.mxu0 %v19
  %153 = vmatmul.mubr.f32.gmra.mxu0 %v18
  %v154 = vpop.f32.mrf.mxu0
  %v155 = vadd.f32 0.0, %v154
  %v156 = vpop.f32.mrf.mxu0
  %157 = vmatprep.mubr.f32.mxu0 %v21
  %158 = vmatmul.mubr.f32.gmra.mxu0 %v20
  %v159 = vpop.f32.mrf.mxu0
  %v160 = vadd.f32 0.0, %v159
  %v161 = vpop.f32.mrf.mxu0
  %162 = vmatprep.mubr.f32.mxu0 %v23
  %163 = vmatmul.mubr.f32.gmra.mxu0 %v22
  %v164 = vpop.f32.mrf.mxu0
  %v165 = vadd.f32 0.0, %v164
  %v166 = vpop.f32.mrf.mxu0
  %167 = vmatprep.mubr.f32.mxu0 %v25
  %168 = vmatmul.mubr.f32.gmra.mxu0 %v24
  %v169 = vpop.f32.mrf.mxu0
  %v170 = vadd.f32 0.0, %v169
  %v171 = vpop.f32.mrf.mxu0
  %172 = vmatprep.mubr.f32.mxu0 %v27
  %173 = vmatmul.mubr.f32.gmra.mxu0 %v26
  %v174 = vpop.f32.mrf.mxu0
  %v175 = vadd.f32 0.0, %v174
  %v176 = vpop.f32.mrf.mxu0
  %177 = vmatprep.mubr.f32.mxu0 %v29
  %178 = vmatmul.mubr.f32.gmra.mxu0 %v28
  %v179 = vpop.f32.mrf.mxu0
  %v180 = vadd.f32 0.0, %v179
  %v181 = vpop.f32.mrf.mxu0
  %182 = vmatprep.mubr.f32.mxu0 %v31
  %183 = vmatmul.mubr.f32.gmra.mxu0 %v30
  %v184 = vpop.f32.mrf.mxu0
  %v185 = vadd.f32 0.0, %v184
  %v186 = vpop.f32.mrf.mxu0
  %187 = vmatprep.mubr.f32.mxu0 %v33
  %188 = vmatmul.mubr.f32.gmra.mxu0 %v32
  %v189 = vpop.f32.mrf.mxu0
  %v190 = vadd.f32 0.0, %v189
  %v191 = vpop.f32.mrf.mxu0
  %192 = vmatprep.mubr.f32.mxu0 %v35
  %193 = vmatmul.mubr.f32.gmra.mxu0 %v34
  %v194 = vpop.f32.mrf.mxu0
  %v195 = vadd.f32 0.0, %v194
  %v196 = vpop.f32.mrf.mxu0
  %197 = vmatprep.mubr.f32.mxu0 %v37
  %198 = vmatmul.mubr.f32.gmra.mxu0 %v36
  %v199 = vpop.f32.mrf.mxu0
  %v200 = vadd.f32 0.0, %v199
  %v201 = vpop.f32.mrf.mxu0
  %202 = vmatprep.mubr.f32.mxu0 %v39
  %203 = vmatmul.mubr.f32.gmra.mxu0 %v38
  %v204 = vpop.f32.mrf.mxu0
  %v205 = vadd.f32 0.0, %v204
  %v206 = vpop.f32.mrf.mxu0
  %207 = vmatprep.mubr.f32.mxu0 %v41
  %208 = vmatmul.mubr.f32.gmra.mxu0 %v40
  %v209 = vpop.f32.mrf.mxu0
  %v210 = vadd.f32 0.0, %v209
  %v211 = vpop.f32.mrf.mxu0
  %212 = vmatprep.mubr.f32.mxu0 %v43
  %213 = vmatmul.mubr.f32.gmra.mxu0 %v42
  %v214 = vpop.f32.mrf.mxu0
  %v215 = vadd.f32 0.0, %v214
  %v216 = vpop.f32.mrf.mxu0
  %217 = vmatprep.mubr.f32.mxu0 %v45
  %218 = vmatmul.mubr.f32.gmra.mxu0 %v44
  %v219 = vpop.f32.mrf.mxu0
  %v220 = vadd.f32 0.0, %v219
  %v221 = vpop.f32.mrf.mxu0
  %222 = vdwg.mxu0
  %v223 = vmul.f32 %v145, %v145
  %v224 = vmul.f32 %v150, %v150
  %v225 = vmul.f32 %v155, %v155
  %v226 = vmul.f32 %v160, %v160
  %v227 = vmul.f32 %v165, %v165
  %v228 = vmul.f32 %v170, %v170
  %v229 = vmul.f32 %v175, %v175
  %v230 = vmul.f32 %v180, %v180
  %v231 = vmul.f32 %v185, %v185
  %v232 = vmul.f32 %v190, %v190
  %v233 = vmul.f32 %v195, %v195
  %v234 = vmul.f32 %v200, %v200
  %v235 = vmul.f32 %v205, %v205
  %v236 = vmul.f32 %v210, %v210
  %v237 = vmul.f32 %v215, %v215
  %v238 = vmul.f32 %v220, %v220
  %v239 = vld [vmem:[%s2] sm:$0xff]
  %v240 = vld [vmem:[%s2 + $0x8] sm:$0xff]
  %v241 = vld [vmem:[%s2 + $0x10] sm:$0xff]
  %v242 = vld [vmem:[%s2 + $0x18] sm:$0xff]
  %v243 = vld [vmem:[%s2 + $0x20] sm:$0xff]
  %v244 = vld [vmem:[%s2 + $0x28] sm:$0xff]
  %v245 = vld [vmem:[%s2 + $0x30] sm:$0xff]
  %v246 = vld [vmem:[%s2 + $0x38] sm:$0xff]
  %v247 = vld [vmem:[%s2 + $0x40] sm:$0xff]
  %v248 = vld [vmem:[%s2 + $0x48] sm:$0xff]
  %v249 = vld [vmem:[%s2 + $0x50] sm:$0xff]
  %v250 = vld [vmem:[%s2 + $0x58] sm:$0xff]
  %v251 = vld [vmem:[%s2 + $0x60] sm:$0xff]
  %v252 = vld [vmem:[%s2 + $0x68] sm:$0xff]
  %v253 = vld [vmem:[%s2 + $0x70] sm:$0xff]
  %v254 = vld [vmem:[%s2 + $0x78] sm:$0xff]
  %255 = vmatprep.subr.mxu0 0.0
  %256 = vmatpush1.msra.mxu0 %v254
  %257 = vmatprep.subr.mxu0 0.0
  %258 = vmatpush1.msra.mxu0 %v253
  %259 = vmatprep.subr.mxu0 0.0
  %260 = vmatpush1.msra.mxu0 %v252
  %261 = vmatprep.subr.mxu0 0.0
  %262 = vmatpush1.msra.mxu0 %v251
  %263 = vmatprep.subr.mxu0 0.0
  %264 = vmatpush1.msra.mxu0 %v250
  %265 = vmatprep.subr.mxu0 0.0
  %266 = vmatpush1.msra.mxu0 %v249
  %267 = vmatprep.subr.mxu0 0.0
  %268 = vmatpush1.msra.mxu0 %v248
  %269 = vmatprep.subr.mxu0 0.0
  %270 = vmatpush1.msra.mxu0 %v247
  %271 = vmatprep.subr.mxu0 0.0
  %272 = vmatpush1.msra.mxu0 %v246
  %273 = vmatprep.subr.mxu0 0.0
  %274 = vmatpush1.msra.mxu0 %v245
  %275 = vmatprep.subr.mxu0 0.0
  %276 = vmatpush1.msra.mxu0 %v244
  %277 = vmatprep.subr.mxu0 0.0
  %278 = vmatpush1.msra.mxu0 %v243
  %279 = vmatprep.subr.mxu0 0.0
  %280 = vmatpush1.msra.mxu0 %v242
  %281 = vmatprep.subr.mxu0 0.0
  %282 = vmatpush1.msra.mxu0 %v241
  %283 = vmatprep.subr.mxu0 0.0
  %284 = vmatpush1.msra.mxu0 %v240
  %285 = vmatprep.subr.mxu0 0.0
  %286 = vmatpush1.msra.mxu0 %v239
  %287 = vmatprep.subr.mxu0 0.0
  %288 = vmatpush2.msra.mxu0 0.0
  %289 = vmatprep.subr.mxu0 0.0
  %290 = vmatpush2.msra.mxu0 0.0
  %291 = vmatprep.subr.mxu0 0.0
  %292 = vmatpush2.msra.mxu0 0.0
  %293 = vmatprep.subr.mxu0 0.0
  %294 = vmatpush2.msra.mxu0 0.0
  %295 = vmatprep.subr.mxu0 0.0
  %296 = vmatpush2.msra.mxu0 0.0
  %297 = vmatprep.subr.mxu0 0.0
  %298 = vmatpush2.msra.mxu0 0.0
  %299 = vmatprep.subr.mxu0 0.0
  %300 = vmatpush2.msra.mxu0 0.0
  %301 = vmatprep.subr.mxu0 0.0
  %302 = vmatpush2.msra.mxu0 0.0
  %303 = vmatprep.subr.mxu0 0.0
  %304 = vmatpush2.msra.mxu0 0.0
  %305 = vmatprep.subr.mxu0 0.0
  %306 = vmatpush2.msra.mxu0 0.0
  %307 = vmatprep.subr.mxu0 0.0
  %308 = vmatpush2.msra.mxu0 0.0
  %309 = vmatprep.subr.mxu0 0.0
  %310 = vmatpush2.msra.mxu0 0.0
  %311 = vmatprep.subr.mxu0 0.0
  %312 = vmatpush2.msra.mxu0 0.0
  %313 = vmatprep.subr.mxu0 0.0
  %314 = vmatpush2.msra.mxu0 0.0
  %315 = vmatprep.subr.mxu0 0.0
  %316 = vmatpush2.msra.mxu0 0.0
  %317 = vmatprep.subr.mxu0 0.0
  %318 = vmatpush2.msra.mxu0 0.0
  %319 = vmatprep.mubr.f32.mxu0 0.0
  %320 = vmatmul.mubr.f32.gmra.mxu0 %v223
  %v321 = vpop.f32.mrf.mxu0
  %v322 = vadd.f32 0.0, %v321
  %v323 = vpop.f32.mrf.mxu0
  %324 = vmatprep.mubr.f32.mxu0 0.0
  %325 = vmatmul.mubr.f32.gmra.mxu0 %v224
  %v326 = vpop.f32.mrf.mxu0
  %v327 = vadd.f32 0.0, %v326
  %v328 = vpop.f32.mrf.mxu0
  %329 = vmatprep.mubr.f32.mxu0 0.0
  %330 = vmatmul.mubr.f32.gmra.mxu0 %v225
  %v331 = vpop.f32.mrf.mxu0
  %v332 = vadd.f32 0.0, %v331
  %v333 = vpop.f32.mrf.mxu0
  %334 = vmatprep.mubr.f32.mxu0 0.0
  %335 = vmatmul.mubr.f32.gmra.mxu0 %v226
  %v336 = vpop.f32.mrf.mxu0
  %v337 = vadd.f32 0.0, %v336
  %v338 = vpop.f32.mrf.mxu0
  %339 = vmatprep.mubr.f32.mxu0 0.0
  %340 = vmatmul.mubr.f32.gmra.mxu0 %v227
  %v341 = vpop.f32.mrf.mxu0
  %v342 = vadd.f32 0.0, %v341
  %v343 = vpop.f32.mrf.mxu0
  %344 = vmatprep.mubr.f32.mxu0 0.0
  %345 = vmatmul.mubr.f32.gmra.mxu0 %v228
  %v346 = vpop.f32.mrf.mxu0
  %v347 = vadd.f32 0.0, %v346
  %v348 = vpop.f32.mrf.mxu0
  %349 = vmatprep.mubr.f32.mxu0 0.0
  %350 = vmatmul.mubr.f32.gmra.mxu0 %v229
  %v351 = vpop.f32.mrf.mxu0
  %v352 = vadd.f32 0.0, %v351
  %v353 = vpop.f32.mrf.mxu0
  %354 = vmatprep.mubr.f32.mxu0 0.0
  %355 = vmatmul.mubr.f32.gmra.mxu0 %v230
  %v356 = vpop.f32.mrf.mxu0
  %v357 = vadd.f32 0.0, %v356
  %v358 = vpop.f32.mrf.mxu0
  %359 = vmatprep.mubr.f32.mxu0 0.0
  %360 = vmatmul.mubr.f32.gmra.mxu0 %v231
  %v361 = vpop.f32.mrf.mxu0
  %v362 = vadd.f32 0.0, %v361
  %v363 = vpop.f32.mrf.mxu0
  %364 = vmatprep.mubr.f32.mxu0 0.0
  %365 = vmatmul.mubr.f32.gmra.mxu0 %v232
  %v366 = vpop.f32.mrf.mxu0
  %v367 = vadd.f32 0.0, %v366
  %v368 = vpop.f32.mrf.mxu0
  %369 = vmatprep.mubr.f32.mxu0 0.0
  %370 = vmatmul.mubr.f32.gmra.mxu0 %v233
  %v371 = vpop.f32.mrf.mxu0
  %v372 = vadd.f32 0.0, %v371
  %v373 = vpop.f32.mrf.mxu0
  %374 = vmatprep.mubr.f32.mxu0 0.0
  %375 = vmatmul.mubr.f32.gmra.mxu0 %v234
  %v376 = vpop.f32.mrf.mxu0
  %v377 = vadd.f32 0.0, %v376
  %v378 = vpop.f32.mrf.mxu0
  %379 = vmatprep.mubr.f32.mxu0 0.0
  %380 = vmatmul.mubr.f32.gmra.mxu0 %v235
  %v381 = vpop.f32.mrf.mxu0
  %v382 = vadd.f32 0.0, %v381
  %v383 = vpop.f32.mrf.mxu0
  %384 = vmatprep.mubr.f32.mxu0 0.0
  %385 = vmatmul.mubr.f32.gmra.mxu0 %v236
  %v386 = vpop.f32.mrf.mxu0
  %v387 = vadd.f32 0.0, %v386
  %v388 = vpop.f32.mrf.mxu0
  %389 = vmatprep.mubr.f32.mxu0 0.0
  %390 = vmatmul.mubr.f32.gmra.mxu0 %v237
  %v391 = vpop.f32.mrf.mxu0
  %v392 = vadd.f32 0.0, %v391
  %v393 = vpop.f32.mrf.mxu0
  %394 = vmatprep.mubr.f32.mxu0 0.0
  %395 = vmatmul.mubr.f32.gmra.mxu0 %v238
  %v396 = vpop.f32.mrf.mxu0
  %v397 = vadd.f32 0.0, %v396
  %v398 = vpop.f32.mrf.mxu0
  %399 = vdwg.mxu0
  %v400 = vmax.f32 %v322, 1e-24
  %v401 = vmax.f32 %v327, 1e-24
  %v402 = vmax.f32 %v332, 1e-24
  %v403 = vmax.f32 %v337, 1e-24
  %v404 = vmax.f32 %v342, 1e-24
  %v405 = vmax.f32 %v347, 1e-24
  %v406 = vmax.f32 %v352, 1e-24
  %v407 = vmax.f32 %v357, 1e-24
  %v408 = vmax.f32 %v362, 1e-24
  %v409 = vmax.f32 %v367, 1e-24
  %v410 = vmax.f32 %v372, 1e-24
  %v411 = vmax.f32 %v377, 1e-24
  %v412 = vmax.f32 %v382, 1e-24
  %v413 = vmax.f32 %v387, 1e-24
  %v414 = vmax.f32 %v392, 1e-24
  %v415 = vmax.f32 %v397, 1e-24
  %v416 = vrsqrt.pop %v400
  %v417 = vrsqrt.pop %v401
  %v418 = vrsqrt.pop %v402
  %v419 = vrsqrt.pop %v403
  %v420 = vrsqrt.pop %v404
  %v421 = vrsqrt.pop %v405
  %v422 = vrsqrt.pop %v406
  %v423 = vrsqrt.pop %v407
  %v424 = vrsqrt.pop %v408
  %v425 = vrsqrt.pop %v409
  %v426 = vrsqrt.pop %v410
  %v427 = vrsqrt.pop %v411
  %v428 = vrsqrt.pop %v412
  %v429 = vrsqrt.pop %v413
  %v430 = vrsqrt.pop %v414
  %v431 = vrsqrt.pop %v415
  %v432 = vmul.f32 %v145, %v416
  %v433 = vmul.f32 %v150, %v417
  %v434 = vmul.f32 %v155, %v418
  %v435 = vmul.f32 %v160, %v419
  %v436 = vmul.f32 %v165, %v420
  %v437 = vmul.f32 %v170, %v421
  %v438 = vmul.f32 %v175, %v422
  %v439 = vmul.f32 %v180, %v423
  %v440 = vmul.f32 %v185, %v424
  %v441 = vmul.f32 %v190, %v425
  %v442 = vmul.f32 %v195, %v426
  %v443 = vmul.f32 %v200, %v427
  %v444 = vmul.f32 %v205, %v428
  %v445 = vmul.f32 %v210, %v429
  %v446 = vmul.f32 %v215, %v430
  %v447 = vmul.f32 %v220, %v431
  %448 = vst [vmem:[%s3] sm:$0xff] %v432
  %449 = vst [vmem:[%s3 + $0x8] sm:$0xff] %v433
  %450 = vst [vmem:[%s3 + $0x10] sm:$0xff] %v434
  %451 = vst [vmem:[%s3 + $0x18] sm:$0xff] %v435
  %452 = vst [vmem:[%s3 + $0x20] sm:$0xff] %v436
  %453 = vst [vmem:[%s3 + $0x28] sm:$0xff] %v437
  %454 = vst [vmem:[%s3 + $0x30] sm:$0xff] %v438
  %455 = vst [vmem:[%s3 + $0x38] sm:$0xff] %v439
  %456 = vst [vmem:[%s3 + $0x40] sm:$0xff] %v440
  %457 = vst [vmem:[%s3 + $0x48] sm:$0xff] %v441
  %458 = vst [vmem:[%s3 + $0x50] sm:$0xff] %v442
  %459 = vst [vmem:[%s3 + $0x58] sm:$0xff] %v443
  %460 = vst [vmem:[%s3 + $0x60] sm:$0xff] %v444
  %461 = vst [vmem:[%s3 + $0x68] sm:$0xff] %v445
  %462 = vst [vmem:[%s3 + $0x70] sm:$0xff] %v446
  %463 = vst [vmem:[%s3 + $0x78] sm:$0xff] %v447
  // Predicated region
  $region14: #{mixer_forward.1} parent=0 // pred_check
    _
  $region15: #{mixer_forward.1} parent=0 // pred_check_branch
    %465 = sbr.rel (0) target = $region17
  $region16: #{mixer_forward.1} parent=0 // pred_region
    _
  $region17: #{mixer_forward.1} parent=0 // pred_fallthru
    _
  // Predicated region
  $region18: #{mixer_forward.1} parent=0 // pred_check
    _
  $region19: #{mixer_forward.1} parent=0 // pred_check_branch
    %467 = sbr.rel (0) target = $region21
  $region20: #{mixer_forward.1} parent=0 // pred_region
    _
  $region21: #{mixer_forward.1} parent=0 // pred_fallthru
    _

</llo_original>
